<compile_context>
chip_gen: v5e
topology: v5e:2x2
jax: 0.10.0
libtpu: 0.0.40
codegen_flags: <defaults>
</compile_context>

<pallas_src>
import functools

import jax
import jax.numpy as jnp
from jax.experimental import pallas as pl
from jax.experimental.pallas import tpu as pltpu

# ----------------------------- configuration -------------------------------
NUM_FEATURES = 128      # stand-in backbone feature dim (resnet50 would be 2048)
DENSE_UNITS = 32        # config.dense_units == [32]
NUM_CLASSES = 10
BN_EPS = 1e-5           # PyTorch BatchNorm1d default

K_RAW = 27              # 3x3 kernel * 3 input channels (im2col contracting dim)
K_PAD = 32              # contracting dim zero-padded for aligned loads
D_PAD = 128             # DENSE_UNITS padded to a lane-dense 128
C_PAD = 128             # NUM_CLASSES padded to a lane-dense 128
ROW_TILE = 128          # HW rows per grid step (multiple of 8)


# ------------------------------ Pallas kernel -------------------------------
def _fused_kernel(p_ref, cw_ref, cb_ref, w1_ref, b1_ref, w2_ref, b2_ref,
                  out_ref, acc_ref, *, inv_hw):
    """Backbone conv-as-matmul + ReLU + online avg-pool, fused with the head."""
    t = pl.program_id(1)

    @pl.when(t == 0)
    def _init():
        acc_ref[...] = jnp.zeros_like(acc_ref)

    # (ROW_TILE, K_PAD) x (K_PAD, Cf): bf16 inputs, f32 accumulation on the MXU.
    y = jnp.dot(p_ref[0], cw_ref[...], preferred_element_type=jnp.float32)
    y = jnp.maximum(y + cb_ref[...], 0.0)                 # bias + ReLU (f32 VPU)
    acc_ref[...] += jnp.sum(y, axis=0, keepdims=True)     # online global-avg-pool

    @pl.when(t == pl.num_programs(1) - 1)
    def _finalize():
        feat = acc_ref[...] * inv_hw                      # (1, Cf) pooled features
        # Head: Linear(+folded BatchNorm1d) -> ReLU -> Dropout(eval=id) -> Linear.
        h = jnp.dot(feat, w1_ref[...],
                    preferred_element_type=jnp.float32) + b1_ref[...]
        h = jnp.maximum(h, 0.0)
        logits = jnp.dot(h, w2_ref[...],
                         preferred_element_type=jnp.float32) + b2_ref[...]
        out_ref[...] = logits[None]                       # (1, 1, C_PAD)


# ------------------------------ JAX glue ------------------------------------
def _im2col_3x3_same(x_nhwc):
    """3x3 'same' patches: (N, H, W, C) -> (N, H*W, 9*C)."""
    n, h, w, c = x_nhwc.shape
    xp = jnp.pad(x_nhwc, ((0, 0), (1, 1), (1, 1), (0, 0)))
    cols = []
    for di in range(3):
        for dj in range(3):
            cols.append(xp[:, di:di + h, dj:dj + w, :])
    patches = jnp.concatenate(cols, axis=-1)              # (N, H, W, 9C)
    return patches.reshape(n, h * w, 9 * c)


def prepare_params(params):
    """Fold eval-mode BatchNorm into (w1, b1), pad to lane-dense shapes, cast."""
    scale = params["bn_gamma"] * jax.lax.rsqrt(params["bn_var"] + BN_EPS)  # (1, D)
    w1f = params["w1"] * scale                                             # (Cf, D)
    b1f = (params["b1"] - params["bn_mean"]) * scale + params["bn_beta"]   # (1, D)

    w1p = jnp.zeros((NUM_FEATURES, D_PAD), jnp.float32).at[:, :DENSE_UNITS].set(w1f)
    b1p = jnp.zeros((1, D_PAD), jnp.float32).at[:, :DENSE_UNITS].set(b1f)
    w2p = jnp.zeros((D_PAD, C_PAD), jnp.float32).at[:DENSE_UNITS, :NUM_CLASSES].set(params["w2"])
    b2p = jnp.zeros((1, C_PAD), jnp.float32).at[:, :NUM_CLASSES].set(params["b2"])
    cwp = (jnp.zeros((K_PAD, NUM_FEATURES), jnp.float32)
           .at[:K_RAW, :].set(params["conv_w"])).astype(jnp.bfloat16)
    return {"conv_w": cwp, "conv_b": params["conv_b"],
            "w1": w1p, "b1": b1p, "w2": w2p, "b2": b2p}


def transfer_learning_forward(x_nchw, params):
    """Forward pass matching TransferLearningModelPyTorch.forward (eval mode)."""
    n, _, h, w = x_nchw.shape
    hw = h * w
    assert hw % ROW_TILE == 0, "spatial size must tile by ROW_TILE"
    t_steps = hw // ROW_TILE

    x_nhwc = jnp.transpose(x_nchw, (0, 2, 3, 1))           # NCHW -> NHWC
    patches = _im2col_3x3_same(x_nhwc)                     # (N, HW, 27) f32
    patches = jnp.pad(patches, ((0, 0), (0, 0), (0, K_PAD - patches.shape[-1])))
    patches = patches.astype(jnp.bfloat16)                 # halve HBM traffic

    kp = prepare_params(params)
    kernel = functools.partial(_fused_kernel, inv_hw=1.0 / float(hw))

    grid_spec = pltpu.PrefetchScalarGridSpec(
        num_scalar_prefetch=0,
        grid=(n, t_steps),
        in_specs=[
            pl.BlockSpec((1, ROW_TILE, K_PAD), lambda b, t: (b, t, 0)),
            pl.BlockSpec((K_PAD, NUM_FEATURES), lambda b, t: (0, 0)),
            pl.BlockSpec((1, NUM_FEATURES), lambda b, t: (0, 0)),
            pl.BlockSpec((NUM_FEATURES, D_PAD), lambda b, t: (0, 0)),
            pl.BlockSpec((1, D_PAD), lambda b, t: (0, 0)),
            pl.BlockSpec((D_PAD, C_PAD), lambda b, t: (0, 0)),
            pl.BlockSpec((1, C_PAD), lambda b, t: (0, 0)),
        ],
        out_specs=pl.BlockSpec((1, 1, C_PAD), lambda b, t: (b, 0, 0)),
        scratch_shapes=[pltpu.VMEM((1, NUM_FEATURES), jnp.float32)],
    )

    flops = (2 * n * hw * K_PAD * NUM_FEATURES
             + 2 * n * (NUM_FEATURES * D_PAD + D_PAD * C_PAD))
    bytes_accessed = int(
        patches.size * 2 + kp["conv_w"].size * 2
        + 4 * (kp["conv_b"].size + kp["w1"].size + kp["b1"].size
               + kp["w2"].size + kp["b2"].size)
        + 4 * n * C_PAD)

    logits_padded = pl.pallas_call(
        kernel,
        out_shape=jax.ShapeDtypeStruct((n, 1, C_PAD), jnp.float32),
        grid_spec=grid_spec,
        compiler_params=pltpu.CompilerParams(
            dimension_semantics=("parallel", "arbitrary"),
            vmem_limit_bytes=32 * 1024 * 1024),
        cost_estimate=pl.CostEstimate(flops=flops, transcendentals=0,
                                      bytes_accessed=bytes_accessed),
    )(patches, kp["conv_w"], kp["conv_b"], kp["w1"], kp["b1"], kp["w2"], kp["b2"])

    return logits_padded[:, 0, :NUM_CLASSES]


def init_params(key, in_channels=3):
    k = jax.random.split(key, 6)
    kdim = 9 * in_channels
    return {
        # backbone conv (im2col form): (27, Cf) weight, (1, Cf) bias
        "conv_w": jax.random.normal(k[0], (kdim, NUM_FEATURES), jnp.float32) * 0.1,
        "conv_b": jax.random.normal(k[1], (1, NUM_FEATURES), jnp.float32) * 0.01,
        # head layer 1: Linear(NUM_FEATURES -> DENSE_UNITS)
        "w1": jax.random.normal(k[2], (NUM_FEATURES, DENSE_UNITS), jnp.float32) * 0.1,
        "b1": jax.random.normal(k[3], (1, DENSE_UNITS), jnp.float32) * 0.01,
        # BatchNorm1d(DENSE_UNITS), eval-mode running stats
        "bn_gamma": jnp.ones((1, DENSE_UNITS), jnp.float32),
        "bn_beta": jnp.zeros((1, DENSE_UNITS), jnp.float32),
        "bn_mean": jnp.zeros((1, DENSE_UNITS), jnp.float32),
        "bn_var": jnp.ones((1, DENSE_UNITS), jnp.float32),
        # final Linear(DENSE_UNITS -> NUM_CLASSES)
        "w2": jax.random.normal(k[4], (DENSE_UNITS, NUM_CLASSES), jnp.float32) * 0.1,
        "b2": jax.random.normal(k[5], (1, NUM_CLASSES), jnp.float32) * 0.01,
    }


# --------------------------- reference (pure JAX) ----------------------------
def reference_forward(x_nchw, params):
    x_nhwc = jnp.transpose(x_nchw, (0, 2, 3, 1))
    patches = _im2col_3x3_same(x_nhwc).astype(jnp.bfloat16)
    cw = params["conv_w"].astype(jnp.bfloat16)
    y = jnp.einsum("nhk,kc->nhc", patches, cw,
                   preferred_element_type=jnp.float32) + params["conv_b"][None]
    y = jnp.maximum(y, 0.0)
    feats = jnp.mean(y, axis=1)
    h = feats @ params["w1"] + params["b1"]
    h = (h - params["bn_mean"]) * jax.lax.rsqrt(params["bn_var"] + BN_EPS) \
        * params["bn_gamma"] + params["bn_beta"]
    h = jnp.maximum(h, 0.0)
    return h @ params["w2"] + params["b2"]


if __name__ == "__main__":
    key = jax.random.PRNGKey(0)
    kx, kp = jax.random.split(key)
    # small image batch: [N=2, C=3, H=16, W=16] (NCHW, PyTorch convention)
    x = jax.random.normal(kx, (2, 3, 16, 16), jnp.float32)
    params = init_params(kp)

    logits = jax.block_until_ready(transfer_learning_forward(x, params))
    ref = reference_forward(x, params)

    assert logits.shape == (2, NUM_CLASSES)
    assert jnp.allclose(logits, ref, atol=5e-3, rtol=5e-3), \
        f"max abs err {jnp.max(jnp.abs(logits - ref))}"
    print("KERNEL_OK")
</pallas_src>

<mosaic_0001>
module attributes {stable_mosaic.version = 11 : i64} {
  func.func @_fused_kernel(%arg0: i32, %arg1: i32, %arg2: memref<1x128x32xbf16, #tpu.memory_space<vmem>>, %arg3: memref<32x128xbf16, #tpu.memory_space<vmem>>, %arg4: memref<1x128xf32, #tpu.memory_space<vmem>>, %arg5: memref<128x128xf32, #tpu.memory_space<vmem>>, %arg6: memref<1x128xf32, #tpu.memory_space<vmem>>, %arg7: memref<128x128xf32, #tpu.memory_space<vmem>>, %arg8: memref<1x128xf32, #tpu.memory_space<vmem>>, %arg9: memref<1x1x128xf32, #tpu.memory_space<vmem>>, %arg10: memref<1x128xf32, #tpu.memory_space<vmem>>) attributes {dimension_semantics = [#tpu.dimension_semantics<parallel>, #tpu.dimension_semantics<arbitrary>], iteration_bounds = array<i64: 2, 2>, scalar_prefetch = 0 : i64, scratch_operands = 1 : i64, tpu.core_type = #tpu.core_type<tc>, window_params = [{transform_indices = @transform_0, window_bounds = array<i64: 1, 128, 32>}, {pipeline_mode = #tpu.pipeline_mode<synchronous>, transform_indices = @transform_1, window_bounds = array<i64: 32, 128>}, {pipeline_mode = #tpu.pipeline_mode<synchronous>, transform_indices = @transform_2, window_bounds = array<i64: 1, 128>}, {pipeline_mode = #tpu.pipeline_mode<synchronous>, transform_indices = @transform_3, window_bounds = array<i64: 128, 128>}, {pipeline_mode = #tpu.pipeline_mode<synchronous>, transform_indices = @transform_4, window_bounds = array<i64: 1, 128>}, {pipeline_mode = #tpu.pipeline_mode<synchronous>, transform_indices = @transform_5, window_bounds = array<i64: 128, 128>}, {pipeline_mode = #tpu.pipeline_mode<synchronous>, transform_indices = @transform_6, window_bounds = array<i64: 1, 128>}, {transform_indices = @transform_7, window_bounds = array<i64: 1, 1, 128>}]} {
    %c0_i32 = arith.constant 0 : i32
    %0 = arith.cmpi eq, %arg1, %c0_i32 : i32
    %1 = arith.extui %0 : i1 to i32
    %c0_i32_0 = arith.constant 0 : i32
    %2 = arith.cmpi ne, %1, %c0_i32_0 : i32
    scf.if %2 {
      %cst_14 = arith.constant 0.000000e+00 : f32
      %20 = vector.broadcast %cst_14 : f32 to vector<1x128xf32>
      %c0_15 = arith.constant 0 : index
      %c0_16 = arith.constant 0 : index
      %21 = vector.load %arg10[%c0_15, %c0_16] : memref<1x128xf32, #tpu.memory_space<vmem>>, vector<1x128xf32>
      tpu.vector_store %arg10[%c0_15, %c0_16], %20 {strides = array<i32>} : memref<1x128xf32, #tpu.memory_space<vmem>>, vector<1x128xf32>,
    } else {
    }
    %c0 = arith.constant 0 : index
    %c0_1 = arith.constant 0 : index
    %c0_2 = arith.constant 0 : index
    %3 = vector.load %arg2[%c0, %c0_1, %c0_2] : memref<1x128x32xbf16, #tpu.memory_space<vmem>>, vector<1x128x32xbf16>
    %4 = vector.shape_cast %3 : vector<1x128x32xbf16> to vector<128x32xbf16>
    %c0_3 = arith.constant 0 : index
    %c0_4 = arith.constant 0 : index
    %5 = vector.load %arg3[%c0_3, %c0_4] : memref<32x128xbf16, #tpu.memory_space<vmem>>, vector<32x128xbf16>
    %cst = arith.constant dense<0.000000e+00> : vector<128x128xf32>
    %6 = tpu.matmul %4, %5, %cst {dimension_numbers = #tpu.dot_dimension_numbers<[1], [0], [0], [1], [0, 0, 1, 1], [], []>} : vector<128x32xbf16>, vector<32x128xbf16>, vector<128x128xf32> -> vector<128x128xf32>
    %c0_5 = arith.constant 0 : index
    %c0_6 = arith.constant 0 : index
    %7 = vector.load %arg4[%c0_5, %c0_6] : memref<1x128xf32, #tpu.memory_space<vmem>>, vector<1x128xf32>
    %8 = vector.broadcast %7 : vector<1x128xf32> to vector<128x128xf32>
    %9 = arith.addf %6, %8 : vector<128x128xf32>
    %cst_7 = arith.constant 0.000000e+00 : f32
    %10 = vector.broadcast %cst_7 : f32 to vector<128x128xf32>
    %11 = arith.maximumf %9, %10 : vector<128x128xf32>
    %c0_8 = arith.constant 0 : index
    %c0_9 = arith.constant 0 : index
    %12 = vector.load %arg10[%c0_8, %c0_9] : memref<1x128xf32, #tpu.memory_space<vmem>>, vector<1x128xf32>
    %cst_10 = arith.constant dense<0.000000e+00> : vector<128xf32>
    %13 = vector.multi_reduction <add>, %11, %cst_10 [0] : vector<128x128xf32> to vector<128xf32>
    %14 = vector.shape_cast %13 : vector<128xf32> to vector<1x128xf32>
    %15 = arith.addf %12, %14 : vector<1x128xf32>
    %c0_11 = arith.constant 0 : index
    %c0_12 = arith.constant 0 : index
    %16 = vector.load %arg10[%c0_11, %c0_12] : memref<1x128xf32, #tpu.memory_space<vmem>>, vector<1x128xf32>
    tpu.vector_store %arg10[%c0_11, %c0_12], %15 {strides = array<i32>} : memref<1x128xf32, #tpu.memory_space<vmem>>, vector<1x128xf32>,
    %c1_i32 = arith.constant 1 : i32
    %17 = arith.cmpi eq, %arg1, %c1_i32 : i32
    %18 = arith.extui %17 : i1 to i32
    %c0_i32_13 = arith.constant 0 : i32
    %19 = arith.cmpi ne, %18, %c0_i32_13 : i32
    scf.if %19 {
      %c0_14 = arith.constant 0 : index
      %c0_15 = arith.constant 0 : index
      %20 = vector.load %arg10[%c0_14, %c0_15] : memref<1x128xf32, #tpu.memory_space<vmem>>, vector<1x128xf32>
      %cst_16 = arith.constant 3.906250e-03 : f32
      %21 = vector.broadcast %cst_16 : f32 to vector<1x128xf32>
      %22 = arith.mulf %20, %21 : vector<1x128xf32>
      %c0_17 = arith.constant 0 : index
      %c0_18 = arith.constant 0 : index
      %23 = vector.load %arg5[%c0_17, %c0_18] : memref<128x128xf32, #tpu.memory_space<vmem>>, vector<128x128xf32>
      %cst_19 = arith.constant dense<0.000000e+00> : vector<1x128xf32>
      %24 = tpu.matmul %22, %23, %cst_19 {dimension_numbers = #tpu.dot_dimension_numbers<[1], [0], [0], [1], [0, 0, 1, 1], [], []>} : vector<1x128xf32>, vector<128x128xf32>, vector<1x128xf32> -> vector<1x128xf32>
      %c0_20 = arith.constant 0 : index
      %c0_21 = arith.constant 0 : index
      %25 = vector.load %arg6[%c0_20, %c0_21] : memref<1x128xf32, #tpu.memory_space<vmem>>, vector<1x128xf32>
      %26 = arith.addf %24, %25 : vector<1x128xf32>
      %cst_22 = arith.constant 0.000000e+00 : f32
      %27 = vector.broadcast %cst_22 : f32 to vector<1x128xf32>
      %28 = arith.maximumf %26, %27 : vector<1x128xf32>
      %c0_23 = arith.constant 0 : index
      %c0_24 = arith.constant 0 : index
      %29 = vector.load %arg7[%c0_23, %c0_24] : memref<128x128xf32, #tpu.memory_space<vmem>>, vector<128x128xf32>
      %cst_25 = arith.constant dense<0.000000e+00> : vector<1x128xf32>
      %30 = tpu.matmul %28, %29, %cst_25 {dimension_numbers = #tpu.dot_dimension_numbers<[1], [0], [0], [1], [0, 0, 1, 1], [], []>} : vector<1x128xf32>, vector<128x128xf32>, vector<1x128xf32> -> vector<1x128xf32>
      %c0_26 = arith.constant 0 : index
      %c0_27 = arith.constant 0 : index
      %31 = vector.load %arg8[%c0_26, %c0_27] : memref<1x128xf32, #tpu.memory_space<vmem>>, vector<1x128xf32>
      %32 = arith.addf %30, %31 : vector<1x128xf32>
      %33 = vector.shape_cast %32 : vector<1x128xf32> to vector<1x1x128xf32>
      %c0_28 = arith.constant 0 : index
      %c0_29 = arith.constant 0 : index
      %c0_30 = arith.constant 0 : index
      %34 = vector.load %arg9[%c0_28, %c0_29, %c0_30] : memref<1x1x128xf32, #tpu.memory_space<vmem>>, vector<1x1x128xf32>
      tpu.vector_store %arg9[%c0_28, %c0_29, %c0_30], %33 {strides = array<i32>} : memref<1x1x128xf32, #tpu.memory_space<vmem>>, vector<1x1x128xf32>,
    } else {
    }
    return
  }
  func.func @transform_0(%arg0: i32, %arg1: i32) -> (i32, i32, i32) {
    %c0_i32 = arith.constant 0 : i32
    %c0_i32_0 = arith.constant 0 : i32
    return %arg0, %arg1, %c0_i32 : i32, i32, i32
  }
  func.func @transform_1(%arg0: i32, %arg1: i32) -> (i32, i32) {
    %c0_i32 = arith.constant 0 : i32
    %c0_i32_0 = arith.constant 0 : i32
    %c0_i32_1 = arith.constant 0 : i32
    return %c0_i32, %c0_i32_0 : i32, i32
  }
  func.func @transform_2(%arg0: i32, %arg1: i32) -> (i32, i32) {
    %c0_i32 = arith.constant 0 : i32
    %c0_i32_0 = arith.constant 0 : i32
    %c0_i32_1 = arith.constant 0 : i32
    return %c0_i32, %c0_i32_0 : i32, i32
  }
  func.func @transform_3(%arg0: i32, %arg1: i32) -> (i32, i32) {
    %c0_i32 = arith.constant 0 : i32
    %c0_i32_0 = arith.constant 0 : i32
    %c0_i32_1 = arith.constant 0 : i32
    return %c0_i32, %c0_i32_0 : i32, i32
  }
  func.func @transform_4(%arg0: i32, %arg1: i32) -> (i32, i32) {
    %c0_i32 = arith.constant 0 : i32
    %c0_i32_0 = arith.constant 0 : i32
    %c0_i32_1 = arith.constant 0 : i32
    return %c0_i32, %c0_i32_0 : i32, i32
  }
  func.func @transform_5(%arg0: i32, %arg1: i32) -> (i32, i32) {
    %c0_i32 = arith.constant 0 : i32
    %c0_i32_0 = arith.constant 0 : i32
    %c0_i32_1 = arith.constant 0 : i32
    return %c0_i32, %c0_i32_0 : i32, i32
  }
  func.func @transform_6(%arg0: i32, %arg1: i32) -> (i32, i32) {
    %c0_i32 = arith.constant 0 : i32
    %c0_i32_0 = arith.constant 0 : i32
    %c0_i32_1 = arith.constant 0 : i32
    return %c0_i32, %c0_i32_0 : i32, i32
  }
  func.func @transform_7(%arg0: i32, %arg1: i32) -> (i32, i32, i32) {
    %c0_i32 = arith.constant 0 : i32
    %c0_i32_0 = arith.constant 0 : i32
    %c0_i32_1 = arith.constant 0 : i32
    return %arg0, %c0_i32, %c0_i32_0 : i32, i32, i32
  }
}

</mosaic_0001>

<llo_original>
// kernel: tpu_custom_call.1
$region0: #{tpu_custom_call.1}
  #allocation0 [shape = 'u32[]', space=smem, size = 0x4, offset = 0x4, fixed_abs, tag = 'smem constant byte address 0x4 - core index']
  #allocation1 [shape = 'u32[72,128]{1,0:T(1,128)}', space=vmem, size = 0x9000, scoped, tag = 'internal scratch']
  #allocation2 [shape = 'f32[1,128]{1,0:T(1,128)}', space=vmem, size = 0x200, scoped, tag = 'scratch operand']
  %s0 = inlined_call_operand.vmem [shape: bf16[2,256,32], index: 0, kind: input, shape index: {}]
  %s1 = inlined_call_operand.vmem [shape: bf16[32,128], index: 1, kind: input, shape index: {}]
  %s2 = inlined_call_operand.vmem [shape: f32[1,128], index: 2, kind: input, shape index: {}]
  %s3 = inlined_call_operand.vmem [shape: f32[128,128], index: 3, kind: input, shape index: {}]
  %s4 = inlined_call_operand.vmem [shape: f32[1,128], index: 4, kind: input, shape index: {}]
  %s5 = inlined_call_operand.vmem [shape: f32[128,128], index: 5, kind: input, shape index: {}]
  %s6 = inlined_call_operand.vmem [shape: f32[1,128], index: 6, kind: input, shape index: {}]
  %s7 = inlined_call_operand.hbm [shape: f32[2,1,128], index: 7, kind: output, shape index: {}]
  %s8 = sld [smem:[#allocation0]]
  $region69: #{tpu_custom_call.1} parent=0
    _
  %s10 = ssub.s32 1, %s8
  %s11 = scalar_select 0, %s10, %s8
  $region1: #{tpu_custom_call.1} parent=0
    #allocation3 [shape = 'u8[1024]{0}', space=vmem, size = 0x400, scoped, tag = 'output window, operand 0']
    #allocation4 [shape = 's32[2]{0}', space=sflag, size = 0x8, scoped, tag = 'scoped memory for tpu_custom_call.1']
    %12 = vsyncpa [#allocation4], 0
    %s13 = scalar_lea.sflag [#allocation4], 1
    %14 = vsyncpa %s13, 0
    loop: start=0, step=1, limit=6
    $region2: #{tpu_custom_call.1} parent=1 // loop_pre_header
      _
    $region3: #{tpu_custom_call.1} parent=1 // loop_header
      %s16 = sphi 0, %s20
      %p17 = scmp.ge.s32.totalorder %s16, 6
      %s23 = sphi 0, %s35
      %s24 = sphi 0, %s31
      %s25 = sphi 0, %s23
      %s26 = sphi 0, %s24
      %s27 = sphi 0, %s25
      %s28 = sphi 0, %s26
      %s40 = sphi 0, %s42
      %s43 = sphi 0, %s40
      %s44 = sphi 0, %s43
      %s60 = sphi 0, %s44
      %s64 = sphi 0, %s64
      %s66 = sphi 0, %s64
      %s67 = sphi 0, %s66
      %s81 = sphi 0, %s67
      %s85 = sphi 0, %s85
      %s87 = sphi 0, %s85
      %s88 = sphi 0, %s87
      %s102 = sphi 0, %s88
      %s106 = sphi 0, %s106
      %s108 = sphi 0, %s106
      %s109 = sphi 0, %s108
      %s123 = sphi 0, %s109
      %s127 = sphi 0, %s127
      %s129 = sphi 0, %s127
      %s130 = sphi 0, %s129
      %s144 = sphi 0, %s130
      %s148 = sphi 0, %s148
      %s150 = sphi 0, %s148
      %s151 = sphi 0, %s150
      %s165 = sphi 0, %s151
      %s169 = sphi 0, %s169
      %s171 = sphi 0, %s169
      %s172 = sphi 0, %s171
      %s186 = sphi 0, %s172
      %s192 = sphi 0, %s194
      %s195 = sphi 0, %s192
      %s196 = sphi 0, %s195
      %s212 = sphi 0, %s196
    $region4: #{tpu_custom_call.1} parent=1 // loop_header_branch
      %19 = sbr.rel (%p17) target = $region8
    $region5: #{tpu_custom_call.1} parent=1 // loop_body
      %s21 = ssub.s32 %s16, 1
      %s22 = ssub.s32 %s16, 2
      %s29 = sadd.s32 1, %s24
      %p30 = scmp.ge.s32.totalorder %s29, 2
      %s31 = scalar_select %p30, 0, %s29
      %s32 = sadd.s32 1, %s23
      %s33 = scalar_select %p30, %s32, %s23
      %p34 = scmp.ge.s32.totalorder %s33, 2
      %s35 = scalar_select %p34, 0, %s33
      %s36 = ssub.s32 %s23, %s35
      %s37 = ssub.s32 %s24, %s31
      %s38 = sor.u32 %s36, %s37
      %p39 = scmp.eq.s32.totalorder %s38, 0
      %s41 = sadd.s32 %s40, 1
      %s42 = scalar_select %p39, %s40, %s41
      %p45 = pneg %p39
      %p46 = scmp.eq.s32.totalorder %s16, 3
      %p47 = por %p45, %p46
      %p48 = scmp.ne.s32.totalorder %s40, %s43
      %p49 = scmp.eq.s32.totalorder %s16, 0
      %p50 = por %p48, %p49
      %p51 = scmp.ne.s32.totalorder %s40, %s43
      %p52 = scmp.eq.s32.totalorder %s21, 3
      %p53 = por %p51, %p52
      %p54 = scmp.ne.s32.totalorder %s43, %s44
      %p55 = scmp.eq.s32.totalorder %s21, 0
      %p56 = por %p54, %p55
      %p57 = scmp.ne.s32.totalorder %s43, %s44
      %p58 = scmp.eq.s32.totalorder %s22, 3
      %p59 = por %p57, %p58
      %p61 = scmp.ne.s32.totalorder %s44, %s60
      %p62 = scmp.eq.s32.totalorder %s22, 0
      %p63 = por %p61, %p62
      %s65 = sadd.s32 %s64, 1
      %p68 = scmp.eq.s32.totalorder %s16, 3
      %p69 = scmp.ne.s32.totalorder %s64, %s66
      %p70 = scmp.eq.s32.totalorder %s16, 0
      %p71 = por %p69, %p70
      %p72 = scmp.ne.s32.totalorder %s64, %s66
      %p73 = scmp.eq.s32.totalorder %s21, 3
      %p74 = por %p72, %p73
      %p75 = scmp.ne.s32.totalorder %s66, %s67
      %p76 = scmp.eq.s32.totalorder %s21, 0
      %p77 = por %p75, %p76
      %p78 = scmp.ne.s32.totalorder %s66, %s67
      %p79 = scmp.eq.s32.totalorder %s22, 3
      %p80 = por %p78, %p79
      %p82 = scmp.ne.s32.totalorder %s67, %s81
      %p83 = scmp.eq.s32.totalorder %s22, 0
      %p84 = por %p82, %p83
      %s86 = sadd.s32 %s85, 1
      %p89 = scmp.eq.s32.totalorder %s16, 3
      %p90 = scmp.ne.s32.totalorder %s85, %s87
      %p91 = scmp.eq.s32.totalorder %s16, 0
      %p92 = por %p90, %p91
      %p93 = scmp.ne.s32.totalorder %s85, %s87
      %p94 = scmp.eq.s32.totalorder %s21, 3
      %p95 = por %p93, %p94
      %p96 = scmp.ne.s32.totalorder %s87, %s88
      %p97 = scmp.eq.s32.totalorder %s21, 0
      %p98 = por %p96, %p97
      %p99 = scmp.ne.s32.totalorder %s87, %s88
      %p100 = scmp.eq.s32.totalorder %s22, 3
      %p101 = por %p99, %p100
      %p103 = scmp.ne.s32.totalorder %s88, %s102
      %p104 = scmp.eq.s32.totalorder %s22, 0
      %p105 = por %p103, %p104
      %s107 = sadd.s32 %s106, 1
      %p110 = scmp.eq.s32.totalorder %s16, 3
      %p111 = scmp.ne.s32.totalorder %s106, %s108
      %p112 = scmp.eq.s32.totalorder %s16, 0
      %p113 = por %p111, %p112
      %p114 = scmp.ne.s32.totalorder %s106, %s108
      %p115 = scmp.eq.s32.totalorder %s21, 3
      %p116 = por %p114, %p115
      %p117 = scmp.ne.s32.totalorder %s108, %s109
      %p118 = scmp.eq.s32.totalorder %s21, 0
      %p119 = por %p117, %p118
      %p120 = scmp.ne.s32.totalorder %s108, %s109
      %p121 = scmp.eq.s32.totalorder %s22, 3
      %p122 = por %p120, %p121
      %p124 = scmp.ne.s32.totalorder %s109, %s123
      %p125 = scmp.eq.s32.totalorder %s22, 0
      %p126 = por %p124, %p125
      %s128 = sadd.s32 %s127, 1
      %p131 = scmp.eq.s32.totalorder %s16, 3
      %p132 = scmp.ne.s32.totalorder %s127, %s129
      %p133 = scmp.eq.s32.totalorder %s16, 0
      %p134 = por %p132, %p133
      %p135 = scmp.ne.s32.totalorder %s127, %s129
      %p136 = scmp.eq.s32.totalorder %s21, 3
      %p137 = por %p135, %p136
      %p138 = scmp.ne.s32.totalorder %s129, %s130
      %p139 = scmp.eq.s32.totalorder %s21, 0
      %p140 = por %p138, %p139
      %p141 = scmp.ne.s32.totalorder %s129, %s130
      %p142 = scmp.eq.s32.totalorder %s22, 3
      %p143 = por %p141, %p142
      %p145 = scmp.ne.s32.totalorder %s130, %s144
      %p146 = scmp.eq.s32.totalorder %s22, 0
      %p147 = por %p145, %p146
      %s149 = sadd.s32 %s148, 1
      %p152 = scmp.eq.s32.totalorder %s16, 3
      %p153 = scmp.ne.s32.totalorder %s148, %s150
      %p154 = scmp.eq.s32.totalorder %s16, 0
      %p155 = por %p153, %p154
      %p156 = scmp.ne.s32.totalorder %s148, %s150
      %p157 = scmp.eq.s32.totalorder %s21, 3
      %p158 = por %p156, %p157
      %p159 = scmp.ne.s32.totalorder %s150, %s151
      %p160 = scmp.eq.s32.totalorder %s21, 0
      %p161 = por %p159, %p160
      %p162 = scmp.ne.s32.totalorder %s150, %s151
      %p163 = scmp.eq.s32.totalorder %s22, 3
      %p164 = por %p162, %p163
      %p166 = scmp.ne.s32.totalorder %s151, %s165
      %p167 = scmp.eq.s32.totalorder %s22, 0
      %p168 = por %p166, %p167
      %s170 = sadd.s32 %s169, 1
      %p173 = scmp.eq.s32.totalorder %s16, 3
      %p174 = scmp.ne.s32.totalorder %s169, %s171
      %p175 = scmp.eq.s32.totalorder %s16, 0
      %p176 = por %p174, %p175
      %p177 = scmp.ne.s32.totalorder %s169, %s171
      %p178 = scmp.eq.s32.totalorder %s21, 3
      %p179 = por %p177, %p178
      %p180 = scmp.ne.s32.totalorder %s171, %s172
      %p181 = scmp.eq.s32.totalorder %s21, 0
      %p182 = por %p180, %p181
      %p183 = scmp.ne.s32.totalorder %s171, %s172
      %p184 = scmp.eq.s32.totalorder %s22, 3
      %p185 = por %p183, %p184
      %p187 = scmp.ne.s32.totalorder %s172, %s186
      %p188 = scmp.eq.s32.totalorder %s22, 0
      %p189 = por %p187, %p188
      %s190 = ssub.s32 %s23, %s35
      %p191 = scmp.eq.s32.totalorder %s190, 0
      %s193 = sadd.s32 %s192, 1
      %s194 = scalar_select %p191, %s192, %s193
      %p197 = pneg %p191
      %p198 = scmp.eq.s32.totalorder %s16, 3
      %p199 = por %p197, %p198
      %p200 = scmp.ne.s32.totalorder %s192, %s195
      %p201 = scmp.eq.s32.totalorder %s16, 0
      %p202 = por %p200, %p201
      %p203 = scmp.ne.s32.totalorder %s192, %s195
      %p204 = scmp.eq.s32.totalorder %s21, 3
      %p205 = por %p203, %p204
      %p206 = scmp.ne.s32.totalorder %s195, %s196
      %p207 = scmp.eq.s32.totalorder %s21, 0
      %p208 = por %p206, %p207
      %p209 = scmp.ne.s32.totalorder %s195, %s196
      %p210 = scmp.eq.s32.totalorder %s22, 3
      %p211 = por %p209, %p210
      %p213 = scmp.ne.s32.totalorder %s196, %s212
      %p214 = scmp.eq.s32.totalorder %s22, 0
      %p215 = por %p213, %p214
      %p216 = scmp.le.s32.totalorder 1, %s16
      %p217 = scmp.lt.s32.totalorder %s16, 5
      %p218 = pnand %p216, %p217
      %p219 = pneg %p218
      // Predicated region
      $region9: #{tpu_custom_call.1} parent=5 // pred_check
        _
      $region10: #{tpu_custom_call.1} parent=5 // pred_check_branch
        %221 = sbr.rel (%p218) target = $region12
      $region11: #{tpu_custom_call.1} parent=5 // pred_region
        %s222 = ssub.s32 %s16, 1
        // Predicated region
        $region13: #{tpu_custom_call.1} parent=11 // pred_check
          %p223 = pneg %p77
        $region14: #{tpu_custom_call.1} parent=11 // pred_check_branch
          %225 = sbr.rel (%p223) target = $region16
        $region15: #{tpu_custom_call.1} parent=11 // pred_region
          _
        $region16: #{tpu_custom_call.1} parent=11 // pred_fallthru
          _
        // Predicated region
        $region17: #{tpu_custom_call.1} parent=11 // pred_check
          %p226 = pneg %p98
        $region18: #{tpu_custom_call.1} parent=11 // pred_check_branch
          %228 = sbr.rel (%p226) target = $region20
        $region19: #{tpu_custom_call.1} parent=11 // pred_region
          _
        $region20: #{tpu_custom_call.1} parent=11 // pred_fallthru
          _
        // Predicated region
        $region21: #{tpu_custom_call.1} parent=11 // pred_check
          %p229 = pneg %p119
        $region22: #{tpu_custom_call.1} parent=11 // pred_check_branch
          %231 = sbr.rel (%p229) target = $region24
        $region23: #{tpu_custom_call.1} parent=11 // pred_region
          _
        $region24: #{tpu_custom_call.1} parent=11 // pred_fallthru
          _
        // Predicated region
        $region25: #{tpu_custom_call.1} parent=11 // pred_check
          %p232 = pneg %p140
        $region26: #{tpu_custom_call.1} parent=11 // pred_check_branch
          %234 = sbr.rel (%p232) target = $region28
        $region27: #{tpu_custom_call.1} parent=11 // pred_region
          _
        $region28: #{tpu_custom_call.1} parent=11 // pred_fallthru
          _
        // Predicated region
        $region29: #{tpu_custom_call.1} parent=11 // pred_check
          %p235 = pneg %p161
        $region30: #{tpu_custom_call.1} parent=11 // pred_check_branch
          %237 = sbr.rel (%p235) target = $region32
        $region31: #{tpu_custom_call.1} parent=11 // pred_region
          _
        $region32: #{tpu_custom_call.1} parent=11 // pred_fallthru
          _
        // Predicated region
        $region33: #{tpu_custom_call.1} parent=11 // pred_check
          %p238 = pneg %p182
        $region34: #{tpu_custom_call.1} parent=11 // pred_check_branch
          %240 = sbr.rel (%p238) target = $region36
        $region35: #{tpu_custom_call.1} parent=11 // pred_region
          _
        $region36: #{tpu_custom_call.1} parent=11 // pred_fallthru
          _
      $region12: #{tpu_custom_call.1} parent=5 // pred_fallthru
        _
      %p241 = scmp.lt.s32.totalorder %s16, 4
      // Predicated region
      $region37: #{tpu_custom_call.1} parent=5 // pred_check
        %p242 = pneg %p241
      $region38: #{tpu_custom_call.1} parent=5 // pred_check_branch
        %244 = sbr.rel (%p242) target = $region40
      $region39: #{tpu_custom_call.1} parent=5 // pred_region
        // Predicated region
        $region41: #{tpu_custom_call.1} parent=39 // pred_check
          %p245 = pneg %p50
        $region42: #{tpu_custom_call.1} parent=39 // pred_check_branch
          %247 = sbr.rel (%p245) target = $region44
        $region43: #{tpu_custom_call.1} parent=39 // pred_region
          %s248 = smul.u32 16, %s24
          %p249 = scmp.lt.s32.totalorder %s23, 1
          %s250 = scalar_select %p249, %s23, 1
          %p251 = scmp.lt.s32.totalorder %s248, 31
          %s252 = scalar_select %p251, %s248, 31
          %s253 = smul.addr %s250, 32
          %s254 = sadd.s32 %s252, %s253
          %s255 = smul.addr %s254, 4
          %s256 = scalar_lea.vmem %s0, %s255
          %s257 = smul.u32 16, %s24
        $region44: #{tpu_custom_call.1} parent=39 // pred_fallthru
          _
      $region40: #{tpu_custom_call.1} parent=5 // pred_fallthru
        _
      %p258 = scmp.le.s32.totalorder 1, %s16
      %p259 = scmp.lt.s32.totalorder %s16, 5
      %p260 = pnand %p258, %p259
      %p261 = pneg %p260
      // Predicated region
      $region45: #{tpu_custom_call.1} parent=5 // pred_check
        _
      $region46: #{tpu_custom_call.1} parent=5 // pred_check_branch
        %263 = sbr.rel (%p260) target = $region48
      $region47: #{tpu_custom_call.1} parent=5 // pred_region
        %s264 = ssub.s32 %s16, 1
        %s265 = smul.u32 16, %s26
        %p266 = scmp.lt.s32.totalorder %s25, 1
        %s267 = scalar_select %p266, %s25, 1
        %p268 = scmp.lt.s32.totalorder %s265, 31
        %s269 = scalar_select %p268, %s265, 31
        %s270 = smul.addr %s267, 32
        %s271 = sadd.s32 %s269, %s270
        %s272 = smul.addr %s271, 4
        %s273 = scalar_lea.vmem %s0, %s272
        %p274 = pneg %p56
        %p275 = pneg %p53
        %p276 = pneg %p77
        %p277 = pneg %p74
        %p278 = pneg %p98
        %p279 = pneg %p95
        %p280 = pneg %p119
        %p281 = pneg %p116
        %p282 = pneg %p140
        %p283 = pneg %p137
        %p284 = pneg %p161
        %p285 = pneg %p158
        %p286 = pneg %p182
        %p287 = pneg %p179
        %p288 = pneg %p208
        %p289 = pneg %p205
        %s290 = sand.u32 %s195, 1
        %s291 = scalar_lea.sflag [#allocation4], %s290
        %s292 = sand.u32 %s195, 1
        %s293 = scalar_lea.vmem [#allocation3], %s292
        %s294 = smul.u32 16, %s26
        %p295 = scmp.lt.s32.totalorder %s25, 1
        %s296 = scalar_select %p295, %s25, 1
        %p297 = scmp.lt.s32.totalorder %s294, 31
        %s298 = scalar_select %p297, %s294, 31
        %s299 = smul.addr %s296, 32
        %s300 = sadd.s32 %s298, %s299
        %s301 = smul.addr %s300, 4
        %s302 = scalar_lea.vmem %s0, %s301
        %s303 = smul.u32 16, %s26
        %p305 = scmp.eq.s32.totalorder %s26, 0
        // Predicated region
        $region49: #{tpu_custom_call.1} parent=47 // pred_check
          %p306 = pneg %p305
        $region50: #{tpu_custom_call.1} parent=47 // pred_check_branch
          %308 = sbr.rel (%p306) target = $region52
        $region51: #{tpu_custom_call.1} parent=47 // pred_region
          %309 = vst [vmem:[#allocation2] sm:$0x1] 0.0
        $region52: #{tpu_custom_call.1} parent=47 // pred_fallthru
          _
        %v310 = vld [vmem:[%s302] sm:$0xf]
        %v311 = vld [vmem:[%s302 + $0x4] sm:$0xf]
        %v312 = vld [vmem:[%s302 + $0x8] sm:$0xf]
        %v313 = vld [vmem:[%s302 + $0xc] sm:$0xf]
        %v314 = vld [vmem:[%s302 + $0x10] sm:$0xf]
        %v315 = vld [vmem:[%s302 + $0x14] sm:$0xf]
        %v316 = vld [vmem:[%s302 + $0x18] sm:$0xf]
        %v317 = vld [vmem:[%s302 + $0x1c] sm:$0xf]
        %v318 = vld [vmem:[%s302 + $0x20] sm:$0xf]
        %v319 = vld [vmem:[%s302 + $0x24] sm:$0xf]
        %v320 = vld [vmem:[%s302 + $0x28] sm:$0xf]
        %v321 = vld [vmem:[%s302 + $0x2c] sm:$0xf]
        %v322 = vld [vmem:[%s302 + $0x30] sm:$0xf]
        %v323 = vld [vmem:[%s302 + $0x34] sm:$0xf]
        %v324 = vld [vmem:[%s302 + $0x38] sm:$0xf]
        %v325 = vld [vmem:[%s302 + $0x3c] sm:$0xf]
        %v326 = vld [vmem:[%s1] sm:$0xf]
        %v327 = vld [vmem:[%s1 + $0x4] sm:$0xf]
        %v328 = vld [vmem:[%s1 + $0x8] sm:$0xf]
        %v329 = vld [vmem:[%s1 + $0xc] sm:$0xf]
        %v330 = vld [vmem:[%s2] sm:$0x1]
        %v332 = vperm.slane %v330, 0
        %v350 = vunpack.c.l.b16 %v310
        %v351 = vunpack.c.l.b16 %v311
        %v352 = vunpack.c.l.b16 %v312
        %v353 = vunpack.c.l.b16 %v313
        %v354 = vunpack.c.l.b16 %v314
        %v355 = vunpack.c.l.b16 %v315
        %v356 = vunpack.c.l.b16 %v316
        %v357 = vunpack.c.l.b16 %v317
        %v358 = vunpack.c.l.b16 %v318
        %v359 = vunpack.c.l.b16 %v319
        %v360 = vunpack.c.l.b16 %v320
        %v361 = vunpack.c.l.b16 %v321
        %v362 = vunpack.c.l.b16 %v322
        %v363 = vunpack.c.l.b16 %v323
        %v364 = vunpack.c.l.b16 %v324
        %v365 = vunpack.c.l.b16 %v325
        %v366 = vpack.c.b16 %v351, %v350
        %v367 = vpack.c.b16 %v353, %v352
        %v368 = vpack.c.b16 %v355, %v354
        %v369 = vpack.c.b16 %v357, %v356
        %v370 = vpack.c.b16 %v359, %v358
        %v371 = vpack.c.b16 %v361, %v360
        %v372 = vpack.c.b16 %v363, %v362
        %v373 = vpack.c.b16 %v365, %v364
        %v378 = vunpack.c.l.b16 %v326
        %v379 = vunpack.c.l.b16 %v327
        %v380 = vunpack.c.l.b16 %v328
        %v381 = vunpack.c.l.b16 %v329
        %v382 = vpack.c.b16 %v379, %v378
        %v383 = vpack.c.b16 %v381, %v380
        %vm386 = vcmask 261120
        %v388 = vsel %vm386, %v366, 0
        %v391 = vsel %vm386, %v367, 0
        %v394 = vsel %vm386, %v368, 0
        %v397 = vsel %vm386, %v369, 0
        %v400 = vsel %vm386, %v370, 0
        %v403 = vsel %vm386, %v371, 0
        %v406 = vsel %vm386, %v372, 0
        %v409 = vsel %vm386, %v373, 0
        %411 = vmatpush.bf16.msra.mxu0 0
        %412 = vmatpush.bf16.msra.mxu0 0
        %413 = vmatpush.bf16.msra.mxu0 0
        %414 = vmatpush.bf16.msra.mxu0 0
        %415 = vmatpush.bf16.msra.mxu0 0
        %416 = vmatpush.bf16.msra.mxu0 0
        %417 = vmatpush.bf16.msra.mxu0 %v383
        %418 = vmatpush.bf16.msra.mxu0 %v382
        %419 = vmatmul.bf16.gmra.mxu0 %v388
        %v420 = vpop.f32.mrf.mxu0
        %v421 = vadd.f32 %v332, %v420
        %v422 = vpop.f32.mrf.mxu0
        %v423 = vadd.f32 %v332, %v422
        %424 = vmatmul.bf16.gmra.mxu0 %v391
        %v425 = vpop.f32.mrf.mxu0
        %v426 = vadd.f32 %v332, %v425
        %v427 = vpop.f32.mrf.mxu0
        %v428 = vadd.f32 %v332, %v427
        %429 = vmatmul.bf16.gmra.mxu0 %v394
        %v430 = vpop.f32.mrf.mxu0
        %v431 = vadd.f32 %v332, %v430
        %v432 = vpop.f32.mrf.mxu0
        %v433 = vadd.f32 %v332, %v432
        %434 = vmatmul.bf16.gmra.mxu0 %v397
        %v435 = vpop.f32.mrf.mxu0
        %v436 = vadd.f32 %v332, %v435
        %v437 = vpop.f32.mrf.mxu0
        %v438 = vadd.f32 %v332, %v437
        %439 = vmatmul.bf16.gmra.mxu0 %v400
        %v440 = vpop.f32.mrf.mxu0
        %v441 = vadd.f32 %v332, %v440
        %v442 = vpop.f32.mrf.mxu0
        %v443 = vadd.f32 %v332, %v442
        %444 = vmatmul.bf16.gmra.mxu0 %v403
        %v445 = vpop.f32.mrf.mxu0
        %v446 = vadd.f32 %v332, %v445
        %v447 = vpop.f32.mrf.mxu0
        %v448 = vadd.f32 %v332, %v447
        %449 = vmatmul.bf16.gmra.mxu0 %v406
        %v450 = vpop.f32.mrf.mxu0
        %v451 = vadd.f32 %v332, %v450
        %v452 = vpop.f32.mrf.mxu0
        %v453 = vadd.f32 %v332, %v452
        %454 = vmatmul.bf16.gmra.mxu0 %v409
        %v455 = vpop.f32.mrf.mxu0
        %v456 = vadd.f32 %v332, %v455
        %v457 = vpop.f32.mrf.mxu0
        %v458 = vadd.f32 %v332, %v457
        %459 = vdwg.mxu0
        %v460 = vmax.f32 %v421, 0.0
        %v461 = vmax.f32 %v423, 0.0
        %v462 = vmax.f32 %v426, 0.0
        %v463 = vmax.f32 %v428, 0.0
        %v464 = vmax.f32 %v431, 0.0
        %v465 = vmax.f32 %v433, 0.0
        %v466 = vmax.f32 %v436, 0.0
        %v467 = vmax.f32 %v438, 0.0
        %v468 = vmax.f32 %v441, 0.0
        %v469 = vmax.f32 %v443, 0.0
        %v470 = vmax.f32 %v446, 0.0
        %v471 = vmax.f32 %v448, 0.0
        %v472 = vmax.f32 %v451, 0.0
        %v473 = vmax.f32 %v453, 0.0
        %v474 = vmax.f32 %v456, 0.0
        %v475 = vmax.f32 %v458, 0.0
        %v476 = vld [vmem:[#allocation2] sm:$0x1]
        %v477 = vadd.f32 %v460, %v461
        %v478 = vadd.f32 %v477, %v462
        %v479 = vadd.f32 %v478, %v463
        %v480 = vadd.f32 %v479, %v464
        %v481 = vadd.f32 %v480, %v465
        %v482 = vadd.f32 %v481, %v466
        %v483 = vadd.f32 %v482, %v467
        %v484 = vadd.f32 %v483, %v468
        %v485 = vadd.f32 %v484, %v469
        %v486 = vadd.f32 %v485, %v470
        %v487 = vadd.f32 %v486, %v471
        %v488 = vadd.f32 %v487, %v472
        %v489 = vadd.f32 %v488, %v473
        %v490 = vadd.f32 %v489, %v474
        %v491 = vadd.f32 %v490, %v475
        %v492 = vrot.slane %v491, 4
        %v493 = vadd.f32 %v491, %v492
        %v494 = vrot.slane %v493, 2
        %v495 = vadd.f32 %v493, %v494
        %v496 = vrot.slane %v495, 1
        %v497 = vadd.f32 %v495, %v496
        %v498 = vadd.f32 %v476, %v497
        %499 = vst [vmem:[#allocation2] sm:$0x1] %v498
        %p500 = scmp.eq.s32.totalorder %s26, 1
        // Predicated region
        $region53: #{tpu_custom_call.1} parent=47 // pred_check
          %p501 = pneg %p500
        $region54: #{tpu_custom_call.1} parent=47 // pred_check_branch
          %503 = sbr.rel (%p501) target = $region56
        $region55: #{tpu_custom_call.1} parent=47 // pred_region
          %v504 = vld [vmem:[#allocation2] sm:$0x1]
          %v505 = vmul.f32 %v504, 0.00390625
          %v506 = vld [vmem:[%s3] sm:$0xff]
          %v507 = vld [vmem:[%s3 + $0x8] sm:$0xff]
          %v508 = vld [vmem:[%s3 + $0x10] sm:$0xff]
          %v509 = vld [vmem:[%s3 + $0x18] sm:$0xff]
          %v510 = vld [vmem:[%s3 + $0x20] sm:$0xff]
          %v511 = vld [vmem:[%s3 + $0x28] sm:$0xff]
          %v512 = vld [vmem:[%s3 + $0x30] sm:$0xff]
          %v513 = vld [vmem:[%s3 + $0x38] sm:$0xff]
          %v514 = vld [vmem:[%s3 + $0x40] sm:$0xff]
          %v515 = vld [vmem:[%s3 + $0x48] sm:$0xff]
          %v516 = vld [vmem:[%s3 + $0x50] sm:$0xff]
          %v517 = vld [vmem:[%s3 + $0x58] sm:$0xff]
          %v518 = vld [vmem:[%s3 + $0x60] sm:$0xff]
          %v519 = vld [vmem:[%s3 + $0x68] sm:$0xff]
          %v520 = vld [vmem:[%s3 + $0x70] sm:$0xff]
          %v521 = vld [vmem:[%s3 + $0x78] sm:$0xff]
          %v522 = vld [vmem:[%s4] sm:$0x1]
          %523 = vmatpush.msra.mxu0 %v521
          %524 = vmatpush.msra.mxu0 %v520
          %525 = vmatpush.msra.mxu0 %v519
          %526 = vmatpush.msra.mxu0 %v518
          %527 = vmatpush.msra.mxu0 %v517
          %528 = vmatpush.msra.mxu0 %v516
          %529 = vmatpush.msra.mxu0 %v515
          %530 = vmatpush.msra.mxu0 %v514
          %531 = vmatpush.msra.mxu0 %v513
          %532 = vmatpush.msra.mxu0 %v512
          %533 = vmatpush.msra.mxu0 %v511
          %534 = vmatpush.msra.mxu0 %v510
          %535 = vmatpush.msra.mxu0 %v509
          %536 = vmatpush.msra.mxu0 %v508
          %537 = vmatpush.msra.mxu0 %v507
          %538 = vmatpush.msra.mxu0 %v506
          %539 = vmatmul.f32.gmra.mxu0 %v505
          %v540 = vpop.f32.mrf.mxu0
          %v541 = vadd.f32 %v522, %v540
          %542 = vdwg.mxu0
          %v543 = vmax.f32 %v541, 0.0
          %v544 = vld [vmem:[%s5] sm:$0xff]
          %v545 = vld [vmem:[%s5 + $0x8] sm:$0xff]
          %v546 = vld [vmem:[%s5 + $0x10] sm:$0xff]
          %v547 = vld [vmem:[%s5 + $0x18] sm:$0xff]
          %v548 = vld [vmem:[%s5 + $0x20] sm:$0xff]
          %v549 = vld [vmem:[%s5 + $0x28] sm:$0xff]
          %v550 = vld [vmem:[%s5 + $0x30] sm:$0xff]
          %v551 = vld [vmem:[%s5 + $0x38] sm:$0xff]
          %v552 = vld [vmem:[%s5 + $0x40] sm:$0xff]
          %v553 = vld [vmem:[%s5 + $0x48] sm:$0xff]
          %v554 = vld [vmem:[%s5 + $0x50] sm:$0xff]
          %v555 = vld [vmem:[%s5 + $0x58] sm:$0xff]
          %v556 = vld [vmem:[%s5 + $0x60] sm:$0xff]
          %v557 = vld [vmem:[%s5 + $0x68] sm:$0xff]
          %v558 = vld [vmem:[%s5 + $0x70] sm:$0xff]
          %v559 = vld [vmem:[%s5 + $0x78] sm:$0xff]
          %v560 = vld [vmem:[%s6] sm:$0x1]
          %561 = vmatpush.msra.mxu0 %v559
          %562 = vmatpush.msra.mxu0 %v558
          %563 = vmatpush.msra.mxu0 %v557
          %564 = vmatpush.msra.mxu0 %v556
          %565 = vmatpush.msra.mxu0 %v555
          %566 = vmatpush.msra.mxu0 %v554
          %567 = vmatpush.msra.mxu0 %v553
          %568 = vmatpush.msra.mxu0 %v552
          %569 = vmatpush.msra.mxu0 %v551
          %570 = vmatpush.msra.mxu0 %v550
          %571 = vmatpush.msra.mxu0 %v549
          %572 = vmatpush.msra.mxu0 %v548
          %573 = vmatpush.msra.mxu0 %v547
          %574 = vmatpush.msra.mxu0 %v546
          %575 = vmatpush.msra.mxu0 %v545
          %576 = vmatpush.msra.mxu0 %v544
          %577 = vmatmul.f32.gmra.mxu0 %v543
          %v578 = vpop.f32.mrf.mxu0
          %v579 = vadd.f32 %v560, %v578
          %580 = vdwg.mxu0
          %581 = vst [vmem:[%s293] sm:$0x1] %v579
        $region56: #{tpu_custom_call.1} parent=47 // pred_fallthru
          _
        %s582 = sand.u32 %s195, 1
        %s583 = scalar_lea.sflag [#allocation4], %s582
        %s584 = sand.u32 %s195, 1
        %s585 = scalar_lea.vmem [#allocation3], %s584
        // Predicated region
        $region57: #{tpu_custom_call.1} parent=47 // pred_check
          %p586 = pneg %p205
        $region58: #{tpu_custom_call.1} parent=47 // pred_check_branch
          %588 = sbr.rel (%p586) target = $region60
        $region59: #{tpu_custom_call.1} parent=47 // pred_region
          %590 = vsyncadd %s583, 0
          %s591 = scalar_lea.hbm %s7, %s25
          %s593 = sshll.u32 %s585, 4
          %s594 = int_to_ptr.vmem [resolvable:$true] %s593
          %s595 = sshll.u32 %s591, 4
          %s596 = int_to_ptr.hbm [resolvable:$true] %s595
          %598 = dma.vmem_to_hbm [thread:$0]  %s594, 16, %s596, %s583
        $region60: #{tpu_custom_call.1} parent=47 // pred_fallthru
          _
      $region48: #{tpu_custom_call.1} parent=5 // pred_fallthru
        _
      %p599 = scmp.le.s32.totalorder 2, %s16
      // Predicated region
      $region61: #{tpu_custom_call.1} parent=5 // pred_check
        %p600 = pneg %p599
      $region62: #{tpu_custom_call.1} parent=5 // pred_check_branch
        %602 = sbr.rel (%p600) target = $region64
      $region63: #{tpu_custom_call.1} parent=5 // pred_region
        %s603 = ssub.s32 %s16, 2
        // Predicated region
        $region65: #{tpu_custom_call.1} parent=63 // pred_check
          %p604 = pneg %p211
        $region66: #{tpu_custom_call.1} parent=63 // pred_check_branch
          %606 = sbr.rel (%p604) target = $region68
        $region67: #{tpu_custom_call.1} parent=63 // pred_region
          %s607 = sand.u32 %s196, 1
          %s608 = scalar_lea.sflag [#allocation4], %s607
          %s609 = sand.u32 %s196, 1
          %s610 = scalar_lea.vmem [#allocation3], %s609
          %612 = dma.done %s608, 16
        $region68: #{tpu_custom_call.1} parent=63 // pred_fallthru
          _
      $region64: #{tpu_custom_call.1} parent=5 // pred_fallthru
        _
    $region6: #{tpu_custom_call.1} parent=1 // loop_footer
      %s20 = sadd.s32 1, %s16
    $region7: #{tpu_custom_call.1} parent=1 // loop_footer_branch
      %15 = sbr.rel target = $region3
    $region8: #{tpu_custom_call.1} parent=1 // loop_exit
      _
    %613 = vsyncpa [#allocation4], 1
    %s614 = scalar_lea.sflag [#allocation4], 1
    %615 = vsyncpa %s614, 1

</llo_original>
